<compile_context>
chip_gen: v5e
topology: v5e:2x2
jax: 0.10.0
libtpu: 0.0.40
codegen_flags: <defaults>
</compile_context>

<pallas_src>
import functools

import jax
import jax.numpy as jnp
from jax.experimental import pallas as pl
from jax.experimental.pallas import tpu as pltpu


_MAX_IO_TILE_BYTES = 16 * 1024 * 1024  # per input/output tile cap


def _round_up(x: int, m: int) -> int:
    return ((x + m - 1) // m) * m


def _sublane_multiple(dtype_bytes: int) -> int:
    # f32 -> 8, bf16/fp16 -> 16, int8/fp8 -> 32 (native packed-sublane sizes).
    return max(8, 32 // max(dtype_bytes, 1))


@functools.lru_cache(maxsize=1)
def _tpu_config():
    """(vmem_tile_budget, vmem_limit_bytes, num_tensorcores_per_chip)."""
    vmem_cap = 64 * 1024 * 1024  # conservative fallback (v7x per-TC VMEM)
    num_cores = 1
    try:
        vmem_cap = int(pltpu.get_tpu_info().vmem_capacity_bytes)
    except Exception:
        pass
    try:
        kind = jax.devices()[0].device_kind.lower()
        if "v7" in kind:  # v7x: 2 TensorCores per chip
            num_cores = 2
    except Exception:
        pass
    budget = vmem_cap // 2          # ~50% for the pipelined tiles
    limit = (vmem_cap * 3) // 4     # ~75% scoped VMEM limit
    return budget, limit, num_cores


def _pick_row_tile(rows: int, dim: int, dtype_bytes: int,
                   vmem_budget: int, num_cores: int) -> int:
    """Largest row tile (multiple of the dtype's sublane size) that fits VMEM."""
    sub = _sublane_multiple(dtype_bytes)

    # Per-row VMEM cost: double-buffered input + output tiles in the I/O dtype,
    # plus ~2 f32 intermediates inside the body.
    per_row = dim * (4 * dtype_bytes + 8)
    tile = vmem_budget // max(per_row, 1)

    # Cap each I/O tile at ~16 MiB (replaces the old flat 1024-row cap): big
    # enough to amortize per-step overhead, small enough to keep the pipeline's
    # working set sane for small dims.
    tile = min(tile, _MAX_IO_TILE_BYTES // max(dim * dtype_bytes, 1))
    tile = max(sub, (tile // sub) * sub)

    # Don't exceed the (sublane-rounded) row count for tiny inputs.
    rows_rounded = _round_up(max(rows, 1), sub)
    tile = min(tile, rows_rounded)

    if num_cores >= 2:
        # v7x: both TensorCores share the ("parallel",) grid axis.  Guarantee
        # >= 2 grid steps (prefer >= 4) so neither core idles; keep tiles
        # sublane-aligned to avoid imbalance from ragged blocks.
        steps = 4 if rows_rounded // sub >= 4 else 2
        cap = _round_up(pl.cdiv(max(rows, 1), steps), sub)
        tile = min(tile, max(cap, sub))
    # Single-TC chips (v5e/v6e): grid is a serial loop — no step-count cap,
    # largest tile wins.

    return max(tile, sub)


def _rmsnorm_kernel(x_ref, w_ref, o_ref, *, eps: float):
    # x_ref: (row_tile, dim), w_ref: (1, dim), o_ref: (row_tile, dim)
    xf = x_ref[...].astype(jnp.float32)
    ms = jnp.mean(xf * xf, axis=-1, keepdims=True)   # (row_tile, 1), f32
    scale = jax.lax.rsqrt(ms + eps)                  # rsqrt on the EUP
    wf = w_ref[...].astype(jnp.float32)
    o_ref[...] = (wf * xf * scale).astype(o_ref.dtype)


def rmsnorm(x: jax.Array, weight: jax.Array, eps: float = 1e-5,
            row_tile: int | None = None) -> jax.Array:
    """RMSNorm over the last axis of x, scaled by `weight` (shape [dim])."""
    orig_shape = x.shape
    dim = orig_shape[-1]
    assert weight.shape == (dim,)

    x2d = x.reshape(-1, dim)
    rows = x2d.shape[0]
    dtype_bytes = jnp.dtype(x.dtype).itemsize

    vmem_budget, vmem_limit, num_cores = _tpu_config()
    if row_tile is None:
        row_tile = _pick_row_tile(rows, dim, dtype_bytes, vmem_budget, num_cores)

    w2d = weight.reshape(1, dim)

    # NOTE: for dim < 128 (lane-sparse) stores are masked; this kernel is tuned
    # for typical LLM hidden sizes (dim a multiple of 128).
    grid = (pl.cdiv(rows, row_tile),)

    cost = pl.CostEstimate(
        flops=6 * rows * dim,          # square, reduce-add, eps, rsqrt-scale, 2 muls
        transcendentals=rows,
        bytes_accessed=2 * rows * dim * dtype_bytes
        + dim * jnp.dtype(weight.dtype).itemsize,
    )

    out = pl.pallas_call(
        functools.partial(_rmsnorm_kernel, eps=eps),
        out_shape=jax.ShapeDtypeStruct((rows, dim), x.dtype),
        grid_spec=pltpu.PrefetchScalarGridSpec(
            num_scalar_prefetch=0,
            grid=grid,
            in_specs=[
                pl.BlockSpec((row_tile, dim), lambda i: (i, 0)),
                pl.BlockSpec((1, dim), lambda i: (0, 0)),
            ],
            out_specs=pl.BlockSpec((row_tile, dim), lambda i: (i, 0)),
        ),
        compiler_params=pltpu.CompilerParams(
            dimension_semantics=("parallel",),
            vmem_limit_bytes=int(vmem_limit),
        ),
        cost_estimate=cost,
    )(x2d, w2d)

    return out.reshape(orig_shape)


def rmsnorm_ref(x, weight, eps=1e-5):
    xf = x.astype(jnp.float32)
    scale = jax.lax.rsqrt(jnp.mean(xf * xf, axis=-1, keepdims=True) + eps)
    return (weight.astype(jnp.float32) * xf * scale).astype(x.dtype)


if __name__ == "__main__":
    key = jax.random.PRNGKey(0)
    batch, seq, dim = 2, 8, 32

    x = jax.random.normal(key, (batch, seq, dim), dtype=jnp.float32)
    # Deterministic parameter init: module uses torch.ones(dim).
    weight = jnp.ones((dim,), dtype=jnp.float32)

    out = rmsnorm(x, weight, eps=1e-5)
    out = jax.block_until_ready(out)

    ref = rmsnorm_ref(x, weight, eps=1e-5)
    assert out.shape == x.shape
    assert jnp.allclose(out, ref, atol=1e-5, rtol=1e-5), "mismatch vs reference"

    print("KERNEL_OK")
</pallas_src>

<mosaic_0001>
module attributes {stable_mosaic.version = 11 : i64} {
  func.func @_rmsnorm_kernel(%arg0: i32, %arg1: memref<16x32xf32, #tpu.memory_space<vmem>>, %arg2: memref<1x32xf32, #tpu.memory_space<vmem>>, %arg3: memref<16x32xf32, #tpu.memory_space<vmem>>) attributes {dimension_semantics = [#tpu.dimension_semantics<parallel>], iteration_bounds = array<i64: 1>, scalar_prefetch = 0 : i64, scratch_operands = 0 : i64, tpu.core_type = #tpu.core_type<tc>, window_params = [{transform_indices = @transform_0, window_bounds = array<i64: 16, 32>}, {pipeline_mode = #tpu.pipeline_mode<synchronous>, transform_indices = @transform_1, window_bounds = array<i64: 1, 32>}, {transform_indices = @transform_2, window_bounds = array<i64: 16, 32>}]} {
    %c0 = arith.constant 0 : index
    %c0_0 = arith.constant 0 : index
    %0 = vector.load %arg1[%c0, %c0_0] : memref<16x32xf32, #tpu.memory_space<vmem>>, vector<16x32xf32>
    %1 = arith.mulf %0, %0 : vector<16x32xf32>
    %cst = arith.constant dense<0.000000e+00> : vector<16xf32>
    %2 = vector.multi_reduction <add>, %1, %cst [1] : vector<16x32xf32> to vector<16xf32>
    %3 = vector.shape_cast %2 : vector<16xf32> to vector<16x1xf32>
    %cst_1 = arith.constant 3.200000e+01 : f32
    %4 = vector.broadcast %cst_1 : f32 to vector<16x1xf32>
    %5 = arith.divf %3, %4 : vector<16x1xf32>
    %cst_2 = arith.constant 9.99999974E-6 : f32
    %6 = vector.broadcast %cst_2 : f32 to vector<16x1xf32>
    %7 = arith.addf %5, %6 : vector<16x1xf32>
    %8 = math.rsqrt %7 : vector<16x1xf32>
    %c0_3 = arith.constant 0 : index
    %c0_4 = arith.constant 0 : index
    %9 = vector.load %arg2[%c0_3, %c0_4] : memref<1x32xf32, #tpu.memory_space<vmem>>, vector<1x32xf32>
    %10 = vector.broadcast %9 : vector<1x32xf32> to vector<16x32xf32>
    %11 = arith.mulf %10, %0 : vector<16x32xf32>
    %12 = vector.broadcast %8 : vector<16x1xf32> to vector<16x32xf32>
    %13 = arith.mulf %11, %12 : vector<16x32xf32>
    %c0_5 = arith.constant 0 : index
    %c0_6 = arith.constant 0 : index
    %14 = vector.load %arg3[%c0_5, %c0_6] : memref<16x32xf32, #tpu.memory_space<vmem>>, vector<16x32xf32>
    tpu.vector_store %arg3[%c0_5, %c0_6], %13 {strides = array<i32>} : memref<16x32xf32, #tpu.memory_space<vmem>>, vector<16x32xf32>,
    return
  }
  func.func @transform_0(%arg0: i32) -> (i32, i32) {
    %c0_i32 = arith.constant 0 : i32
    %c0_i32_0 = arith.constant 0 : i32
    return %arg0, %c0_i32 : i32, i32
  }
  func.func @transform_1(%arg0: i32) -> (i32, i32) {
    %c0_i32 = arith.constant 0 : i32
    %c0_i32_0 = arith.constant 0 : i32
    %c0_i32_1 = arith.constant 0 : i32
    return %c0_i32, %c0_i32_0 : i32, i32
  }
  func.func @transform_2(%arg0: i32) -> (i32, i32) {
    %c0_i32 = arith.constant 0 : i32
    %c0_i32_0 = arith.constant 0 : i32
    return %arg0, %c0_i32 : i32, i32
  }
}

</mosaic_0001>

<llo_original>
// kernel: tpu_custom_call.1
$region0: #{tpu_custom_call.1}
  #allocation0 [shape = 'u32[]', space=smem, size = 0x4, offset = 0x4, fixed_abs, tag = 'smem constant byte address 0x4 - core index']
  #allocation1 [shape = 'u32[72,128]{1,0:T(1,128)}', space=vmem, size = 0x9000, scoped, tag = 'internal scratch']
  %s0 = inlined_call_operand.hbm [shape: f32[16,32], index: 0, kind: input, shape index: {}]
  %s1 = inlined_call_operand.hbm [shape: f32[1,32], index: 1, kind: input, shape index: {}]
  %s2 = inlined_call_operand.hbm [shape: f32[16,32], index: 2, kind: output, shape index: {}]
  %s3 = sld [smem:[#allocation0]]
  $region26: #{tpu_custom_call.1} parent=0
    _
  %s5 = ssub.s32 1, %s3
  %s6 = scalar_select 0, %s5, %s3
  $region1: #{tpu_custom_call.1} parent=0
    #allocation2 [shape = 'u8[8192]{0}', space=vmem, size = 0x2000, scoped, tag = 'input window, operand 0, single buffered']
    #allocation3 [shape = 's32[1]{0}', space=sflag, size = 0x4, scoped, tag = 'scoped memory for tpu_custom_call.1']
    #allocation4 [shape = 's32[1]{0}', space=sflag, size = 0x4, scoped, tag = 'scoped memory for tpu_custom_call.1']
    #allocation5 [shape = 'u8[512]{0}', space=vmem, size = 0x400, scoped, tag = 'input window, operand 1, single buffered']
    #allocation6 [shape = 's32[1]{0}', space=sflag, size = 0x4, scoped, tag = 'scoped memory for tpu_custom_call.1']
    #allocation7 [shape = 'u8[8192]{0}', space=vmem, size = 0x2000, scoped, tag = 'output window, operand 0, single buffered']
    %7 = vsyncpa [#allocation3], 0
    %8 = vsyncpa [#allocation6], 0
    %9 = vsyncpa [#allocation4], 0
    // Predicated region
    $region2: #{tpu_custom_call.1} parent=1 // pred_check
      _
    $region3: #{tpu_custom_call.1} parent=1 // pred_check_branch
      %11 = sbr.rel (0) target = $region5
    $region4: #{tpu_custom_call.1} parent=1 // pred_region
      %13 = vsyncadd [#allocation3], 0
      %s14 = sshll.u32 %s0, 4
      %s15 = int_to_ptr.hbm [resolvable:$true] %s14
      %s16 = sshll.u32 [#allocation2], 4
      %s17 = int_to_ptr.vmem [resolvable:$true] %s16
      %22 = dma.hbm_to_vmem [thread:$0]  %s15, 256, %s17, [#allocation3], 128, 128, 8
    $region5: #{tpu_custom_call.1} parent=1 // pred_fallthru
      _
    // Predicated region
    $region6: #{tpu_custom_call.1} parent=1 // pred_check
      _
    $region7: #{tpu_custom_call.1} parent=1 // pred_check_branch
      %24 = sbr.rel (0) target = $region9
    $region8: #{tpu_custom_call.1} parent=1 // pred_region
      %26 = vsyncadd [#allocation6], 0
      %s28 = sshll.u32 %s1, 4
      %s29 = int_to_ptr.hbm [resolvable:$true] %s28
      %s30 = sshll.u32 [#allocation5], 4
      %s31 = int_to_ptr.vmem [resolvable:$true] %s30
      %33 = dma.hbm_to_vmem [thread:$0]  %s29, 16, %s31, [#allocation6]
    $region9: #{tpu_custom_call.1} parent=1 // pred_fallthru
      _
    // Predicated region
    $region10: #{tpu_custom_call.1} parent=1 // pred_check
      _
    $region11: #{tpu_custom_call.1} parent=1 // pred_check_branch
      %35 = sbr.rel (0) target = $region13
    $region12: #{tpu_custom_call.1} parent=1 // pred_region
      %37 = dma.done [#allocation3], 256
    $region13: #{tpu_custom_call.1} parent=1 // pred_fallthru
      _
    // Predicated region
    $region14: #{tpu_custom_call.1} parent=1 // pred_check
      _
    $region15: #{tpu_custom_call.1} parent=1 // pred_check_branch
      %39 = sbr.rel (0) target = $region17
    $region16: #{tpu_custom_call.1} parent=1 // pred_region
      %41 = dma.done [#allocation6], 16
    $region17: #{tpu_custom_call.1} parent=1 // pred_fallthru
      _
    %v42 = vld [vmem:[#allocation2] sm:$0xff]
    %v43 = vld [vmem:[#allocation2 + $0x8] sm:$0xff]
    %v44 = vmul.f32 %v42, %v42
    %v45 = vmul.f32 %v43, %v43
    %vm46 = vcmask 261120
    %v47 = vsel %vm46, %v44, 0.0
    %48 = vadd.xlane.f32.xlu0 %v47
    %v49 = vpop.xlane.xlu0 %48
    %v50 = vsel %vm46, %v45, 0.0
    %51 = vadd.xlane.f32.xlu0 %v50
    %v52 = vpop.xlane.xlu0 %51
    %v53 = vrcp.pop 32.0
    %v54 = vmul.f32 32.0, %v53
    %v55 = vsub.f32 1.0, %v54
    %v56 = vmul.f32 %v53, %v55
    %v57 = vadd.f32 %v53, %v56
    %vm58 = vweird.f32 %v53
    %v59 = vsel %vm58, %v53, %v57
    %v60 = vmul.f32 %v49, %v59
    %v61 = vmul.f32 %v52, %v59
    %v62 = vadd.f32 %v60, 1e-05
    %v63 = vadd.f32 %v61, 1e-05
    %v64 = vrsqrt.pop %v62
    %v65 = vmul.f32 %v64, %v62
    %v66 = vmul.f32 %v65, %v64
    %v67 = vmul.f32 0.5, %v66
    %v68 = vsub.f32 1.5, %v67
    %v69 = vmul.f32 %v64, %v68
    %vm70 = vweird.f32 %v62
    %vm71 = vweird.f32 %v64
    %vm72 = vmor %vm70, %vm71
    %v73 = vsel %vm72, %v64, %v69
    %v74 = vrsqrt.pop %v63
    %v75 = vmul.f32 %v74, %v63
    %v76 = vmul.f32 %v75, %v74
    %v77 = vmul.f32 0.5, %v76
    %v78 = vsub.f32 1.5, %v77
    %v79 = vmul.f32 %v74, %v78
    %vm80 = vweird.f32 %v63
    %vm81 = vweird.f32 %v74
    %vm82 = vmor %vm80, %vm81
    %v83 = vsel %vm82, %v74, %v79
    %v84 = vld [vmem:[#allocation5] sm:$0x1]
    %v86 = vperm.slane %v84, 0
    %v88 = vmul.f32 %v86, %v42
    %v89 = vmul.f32 %v86, %v43
    %v90 = vmul.f32 %v88, %v73
    %v91 = vmul.f32 %v89, %v83
    %92 = vst.msk [vmem:[#allocation7] sm:$0xff] %vm46, %v90
    %93 = vst.msk [vmem:[#allocation7 + $0x8] sm:$0xff] %vm46, %v91
    // Predicated region
    $region18: #{tpu_custom_call.1} parent=1 // pred_check
      _
    $region19: #{tpu_custom_call.1} parent=1 // pred_check_branch
      %95 = sbr.rel (0) target = $region21
    $region20: #{tpu_custom_call.1} parent=1 // pred_region
      %97 = vsyncadd [#allocation4], 0
      %s98 = sshll.u32 [#allocation7], 4
      %s99 = int_to_ptr.vmem [resolvable:$true] %s98
      %s100 = sshll.u32 %s2, 4
      %s101 = int_to_ptr.hbm [resolvable:$true] %s100
      %106 = dma.vmem_to_hbm [thread:$0]  %s99, 256, %s101, [#allocation4], 128, 128, 8
    $region21: #{tpu_custom_call.1} parent=1 // pred_fallthru
      _
    // Predicated region
    $region22: #{tpu_custom_call.1} parent=1 // pred_check
      _
    $region23: #{tpu_custom_call.1} parent=1 // pred_check_branch
      %108 = sbr.rel (0) target = $region25
    $region24: #{tpu_custom_call.1} parent=1 // pred_region
      %110 = dma.done [#allocation4], 256
    $region25: #{tpu_custom_call.1} parent=1 // pred_fallthru
      _
    %111 = vsyncpa [#allocation3], 1
    %112 = vsyncpa [#allocation6], 1
    %113 = vsyncpa [#allocation4], 1

</llo_original>
